<compile_context>
chip_gen: v7x
topology: tpu7x:2x2x1
jax: 0.10.0
libtpu: 0.0.40
codegen_flags: <defaults>
</compile_context>

<pallas_src>
import jax
import jax.numpy as jnp
from jax.experimental import pallas as pl
from jax.experimental.pallas import tpu as pltpu


def _round_up(n, m):
    return ((n + m - 1) // m) * m


def autoencoder_kernel(x_ref,
                       w1_ref, b1_ref,
                       w2_ref, b2_ref,
                       w3_ref, b3_ref,
                       w4_ref, b4_ref,
                       out_ref):
    """One batch tile of the fused forward pass.

    Matmul operands are bf16 (MXU), accumulation is f32
    (preferred_element_type), and all elementwise epilogues (bias add, ReLU,
    sigmoid) run in f32 on the VPU/EUP. Biases are [1, out] and broadcast
    implicitly (no materialized broadcast per grid step)."""
    x = x_ref[...]                                                  # bf16 [tb, Fp]

    # ---- encoder ----
    h1 = jnp.dot(x, w1_ref[...], preferred_element_type=jnp.float32) + b1_ref[...]
    h1 = jnp.maximum(h1, 0.0).astype(jnp.bfloat16)                  # [tb, H]
    z = jnp.dot(h1, w2_ref[...], preferred_element_type=jnp.float32) + b2_ref[...]
    z = jnp.maximum(z, 0.0).astype(jnp.bfloat16)                    # [tb, L]

    # ---- decoder ----
    h2 = jnp.dot(z, w3_ref[...], preferred_element_type=jnp.float32) + b3_ref[...]
    h2 = jnp.maximum(h2, 0.0).astype(jnp.bfloat16)                  # [tb, H]
    y = jnp.dot(h2, w4_ref[...], preferred_element_type=jnp.float32) + b4_ref[...]
    y = jax.nn.sigmoid(y)                                           # f32 [tb, Fp]

    out_ref[...] = y.astype(out_ref.dtype)


def autoencoder_forward(x, params, *, tile_b=256):
    """x: [B, F] float32. params: pre-transposed weights [in, out] (f32) and
    biases [1, out] (f32). Returns [B, F] float32.

    The wrapper pads F to a lane-dense multiple of 128 and B to a multiple of
    the batch tile, runs a 1-D batch grid, and slices the padding away."""
    w1, b1 = params["w1"], params["b1"]
    w2, b2 = params["w2"], params["b2"]
    w3, b3 = params["w3"], params["b3"]
    w4, b4 = params["w4"], params["b4"]

    B, F = x.shape
    H = w1.shape[1]
    L = w2.shape[1]

    F_pad = _round_up(F, 128)               # lane-dense input load / output store
    tile_b = min(tile_b, _round_up(B, 8))   # don't over-pad tiny batches
    B_pad = _round_up(B, tile_b)

    # Pad + cast matmul operands to bf16 (zero padding keeps the math exact
    # for the real rows/cols; padded output columns are sliced off below).
    x_p = jnp.pad(x, ((0, B_pad - B), (0, F_pad - F))).astype(jnp.bfloat16)
    w1p = jnp.pad(w1, ((0, F_pad - F), (0, 0))).astype(jnp.bfloat16)   # [Fp, H]
    w2p = w2.astype(jnp.bfloat16)                                      # [H, L]
    w3p = w3.astype(jnp.bfloat16)                                      # [L, H]
    w4p = jnp.pad(w4, ((0, 0), (0, F_pad - F))).astype(jnp.bfloat16)   # [H, Fp]
    b4p = jnp.pad(b4, ((0, 0), (0, F_pad - F)))                        # f32 [1, Fp]

    grid = (B_pad // tile_b,)

    # Batch-tiled specs for x / out; constant index_maps keep weights + biases
    # resident in VMEM across every grid step (fetched once).
    x_spec = pl.BlockSpec((tile_b, F_pad), lambda i: (i, 0))
    out_spec = pl.BlockSpec((tile_b, F_pad), lambda i: (i, 0))
    resident = lambda a: pl.BlockSpec(a.shape, lambda i: (0,) * a.ndim)

    flops = 2 * B_pad * (F_pad * H + H * L + L * H + H * F_pad)
    bytes_accessed = (
        2 * (x_p.size + w1p.size + w2p.size + w3p.size + w4p.size)   # bf16
        + 4 * (b1.size + b2.size + b3.size + b4p.size)               # f32 biases
        + 4 * B_pad * F_pad                                          # f32 output
    )
    cost = pl.CostEstimate(flops=flops,
                           transcendentals=B_pad * F_pad,            # sigmoid
                           bytes_accessed=bytes_accessed)

    out_padded = pl.pallas_call(
        autoencoder_kernel,
        out_shape=jax.ShapeDtypeStruct((B_pad, F_pad), jnp.float32),
        grid=grid,
        in_specs=[x_spec,
                  resident(w1p), resident(b1),
                  resident(w2p), resident(b2),
                  resident(w3p), resident(b3),
                  resident(w4p), resident(b4p)],
        out_specs=out_spec,
        compiler_params=pltpu.CompilerParams(
            dimension_semantics=("parallel",),      # v7x: shard batch over 2 TCs
            vmem_limit_bytes=32 << 20,              # generous but leaves headroom
        ),
        cost_estimate=cost,
    )(x_p, w1p, b1, w2p, b2, w3p, b3, w4p, b4p)

    return out_padded[:B, :F]


def init_params(key, num_features, hidden_dim, latent_dim):
    """Deterministic init mimicking PyTorch nn.Linear default
    (uniform in [-1/sqrt(fan_in), 1/sqrt(fan_in)]). Weights returned
    pre-transposed to [in, out]; biases as [1, out] for lane layout."""
    def linear(key, fan_in, fan_out):
        kw, kb = jax.random.split(key)
        bound = 1.0 / jnp.sqrt(float(fan_in))
        w = jax.random.uniform(kw, (fan_in, fan_out), jnp.float32, -bound, bound)
        b = jax.random.uniform(kb, (1, fan_out), jnp.float32, -bound, bound)
        return w, b

    k1, k2, k3, k4 = jax.random.split(key, 4)
    w1, b1 = linear(k1, num_features, hidden_dim)   # encoder layer 1
    w2, b2 = linear(k2, hidden_dim, latent_dim)     # encoder layer 2
    w3, b3 = linear(k3, latent_dim, hidden_dim)     # decoder layer 1
    w4, b4 = linear(k4, hidden_dim, num_features)   # decoder layer 2
    return dict(w1=w1, b1=b1, w2=w2, b2=b2, w3=w3, b3=b3, w4=w4, b4=b4)


def reference_forward(x, p):
    """Pure-JAX f32 reference with identical semantics (for sanity check)."""
    h = jnp.maximum(x @ p["w1"] + p["b1"], 0.0)
    z = jnp.maximum(h @ p["w2"] + p["b2"], 0.0)
    h = jnp.maximum(z @ p["w3"] + p["b3"], 0.0)
    return jax.nn.sigmoid(h @ p["w4"] + p["b4"])


if __name__ == "__main__":
    # Small shapes consistent with the module: flat one-hot DNA features.
    batch = 64            # small, but > tile so the batch grid has >1 step
    num_features = 16     # X_train.shape[1] analogue (kept small)
    hidden_dim = 128
    latent_dim = 256

    key = jax.random.PRNGKey(0)
    kx, kp = jax.random.split(key)
    # Synthetic "DNA sequences": values in [0, 1] like one-hot-ish encodings.
    x = jax.random.uniform(kx, (batch, num_features), jnp.float32)
    params = init_params(kp, num_features, hidden_dim, latent_dim)

    # tile_b=16 so the demo exercises a multi-step batch grid with resident
    # weights; production batches use the default tile_b=256.
    out = autoencoder_forward(x, params, tile_b=16)
    out = jax.block_until_ready(out)

    ref = reference_forward(x, params)
    assert out.shape == (batch, num_features)
    # bf16 matmul operands with f32 accumulation vs an f32 reference.
    assert jnp.allclose(out, ref, atol=1e-2, rtol=0.0), float(
        jnp.max(jnp.abs(out - ref)))

    print("KERNEL_OK")
</pallas_src>

<mosaic_0001>
module attributes {stable_mosaic.version = 11 : i64} {
  func.func @autoencoder_kernel(%arg0: i32, %arg1: memref<16x128xbf16, #tpu.memory_space<vmem>>, %arg2: memref<128x128xbf16, #tpu.memory_space<vmem>>, %arg3: memref<1x128xf32, #tpu.memory_space<vmem>>, %arg4: memref<128x256xbf16, #tpu.memory_space<vmem>>, %arg5: memref<1x256xf32, #tpu.memory_space<vmem>>, %arg6: memref<256x128xbf16, #tpu.memory_space<vmem>>, %arg7: memref<1x128xf32, #tpu.memory_space<vmem>>, %arg8: memref<128x128xbf16, #tpu.memory_space<vmem>>, %arg9: memref<1x128xf32, #tpu.memory_space<vmem>>, %arg10: memref<16x128xf32, #tpu.memory_space<vmem>>) attributes {dimension_semantics = [#tpu.dimension_semantics<parallel>], iteration_bounds = array<i64: 4>, scalar_prefetch = 0 : i64, scratch_operands = 0 : i64, tpu.core_type = #tpu.core_type<tc>, window_params = [{transform_indices = @transform_0, window_bounds = array<i64: 16, 128>}, {pipeline_mode = #tpu.pipeline_mode<synchronous>, transform_indices = @transform_1, window_bounds = array<i64: 128, 128>}, {pipeline_mode = #tpu.pipeline_mode<synchronous>, transform_indices = @transform_2, window_bounds = array<i64: 1, 128>}, {pipeline_mode = #tpu.pipeline_mode<synchronous>, transform_indices = @transform_3, window_bounds = array<i64: 128, 256>}, {pipeline_mode = #tpu.pipeline_mode<synchronous>, transform_indices = @transform_4, window_bounds = array<i64: 1, 256>}, {pipeline_mode = #tpu.pipeline_mode<synchronous>, transform_indices = @transform_5, window_bounds = array<i64: 256, 128>}, {pipeline_mode = #tpu.pipeline_mode<synchronous>, transform_indices = @transform_6, window_bounds = array<i64: 1, 128>}, {pipeline_mode = #tpu.pipeline_mode<synchronous>, transform_indices = @transform_7, window_bounds = array<i64: 128, 128>}, {pipeline_mode = #tpu.pipeline_mode<synchronous>, transform_indices = @transform_8, window_bounds = array<i64: 1, 128>}, {transform_indices = @transform_9, window_bounds = array<i64: 16, 128>}]} {
    %c0 = arith.constant 0 : index
    %c0_0 = arith.constant 0 : index
    %0 = vector.load %arg1[%c0, %c0_0] : memref<16x128xbf16, #tpu.memory_space<vmem>>, vector<16x128xbf16>
    %c0_1 = arith.constant 0 : index
    %c0_2 = arith.constant 0 : index
    %1 = vector.load %arg2[%c0_1, %c0_2] : memref<128x128xbf16, #tpu.memory_space<vmem>>, vector<128x128xbf16>
    %cst = arith.constant dense<0.000000e+00> : vector<16x128xf32>
    %2 = tpu.matmul %0, %1, %cst {dimension_numbers = #tpu.dot_dimension_numbers<[1], [0], [0], [1], [0, 0, 1, 1], [], []>} : vector<16x128xbf16>, vector<128x128xbf16>, vector<16x128xf32> -> vector<16x128xf32>
    %c0_3 = arith.constant 0 : index
    %c0_4 = arith.constant 0 : index
    %3 = vector.load %arg3[%c0_3, %c0_4] : memref<1x128xf32, #tpu.memory_space<vmem>>, vector<1x128xf32>
    %4 = vector.broadcast %3 : vector<1x128xf32> to vector<16x128xf32>
    %5 = arith.addf %2, %4 : vector<16x128xf32>
    %cst_5 = arith.constant 0.000000e+00 : f32
    %6 = vector.broadcast %cst_5 : f32 to vector<16x128xf32>
    %7 = arith.maximumf %5, %6 : vector<16x128xf32>
    %8 = arith.truncf %7 : vector<16x128xf32> to vector<16x128xbf16>
    %c0_6 = arith.constant 0 : index
    %c0_7 = arith.constant 0 : index
    %9 = vector.load %arg4[%c0_6, %c0_7] : memref<128x256xbf16, #tpu.memory_space<vmem>>, vector<128x256xbf16>
    %cst_8 = arith.constant dense<0.000000e+00> : vector<16x256xf32>
    %10 = tpu.matmul %8, %9, %cst_8 {dimension_numbers = #tpu.dot_dimension_numbers<[1], [0], [0], [1], [0, 0, 1, 1], [], []>} : vector<16x128xbf16>, vector<128x256xbf16>, vector<16x256xf32> -> vector<16x256xf32>
    %c0_9 = arith.constant 0 : index
    %c0_10 = arith.constant 0 : index
    %11 = vector.load %arg5[%c0_9, %c0_10] : memref<1x256xf32, #tpu.memory_space<vmem>>, vector<1x256xf32>
    %12 = vector.broadcast %11 : vector<1x256xf32> to vector<16x256xf32>
    %13 = arith.addf %10, %12 : vector<16x256xf32>
    %cst_11 = arith.constant 0.000000e+00 : f32
    %14 = vector.broadcast %cst_11 : f32 to vector<16x256xf32>
    %15 = arith.maximumf %13, %14 : vector<16x256xf32>
    %16 = arith.truncf %15 : vector<16x256xf32> to vector<16x256xbf16>
    %c0_12 = arith.constant 0 : index
    %c0_13 = arith.constant 0 : index
    %17 = vector.load %arg6[%c0_12, %c0_13] : memref<256x128xbf16, #tpu.memory_space<vmem>>, vector<256x128xbf16>
    %cst_14 = arith.constant dense<0.000000e+00> : vector<16x128xf32>
    %18 = tpu.matmul %16, %17, %cst_14 {dimension_numbers = #tpu.dot_dimension_numbers<[1], [0], [0], [1], [0, 0, 1, 1], [], []>} : vector<16x256xbf16>, vector<256x128xbf16>, vector<16x128xf32> -> vector<16x128xf32>
    %c0_15 = arith.constant 0 : index
    %c0_16 = arith.constant 0 : index
    %19 = vector.load %arg7[%c0_15, %c0_16] : memref<1x128xf32, #tpu.memory_space<vmem>>, vector<1x128xf32>
    %20 = vector.broadcast %19 : vector<1x128xf32> to vector<16x128xf32>
    %21 = arith.addf %18, %20 : vector<16x128xf32>
    %cst_17 = arith.constant 0.000000e+00 : f32
    %22 = vector.broadcast %cst_17 : f32 to vector<16x128xf32>
    %23 = arith.maximumf %21, %22 : vector<16x128xf32>
    %24 = arith.truncf %23 : vector<16x128xf32> to vector<16x128xbf16>
    %c0_18 = arith.constant 0 : index
    %c0_19 = arith.constant 0 : index
    %25 = vector.load %arg8[%c0_18, %c0_19] : memref<128x128xbf16, #tpu.memory_space<vmem>>, vector<128x128xbf16>
    %cst_20 = arith.constant dense<0.000000e+00> : vector<16x128xf32>
    %26 = tpu.matmul %24, %25, %cst_20 {dimension_numbers = #tpu.dot_dimension_numbers<[1], [0], [0], [1], [0, 0, 1, 1], [], []>} : vector<16x128xbf16>, vector<128x128xbf16>, vector<16x128xf32> -> vector<16x128xf32>
    %c0_21 = arith.constant 0 : index
    %c0_22 = arith.constant 0 : index
    %27 = vector.load %arg9[%c0_21, %c0_22] : memref<1x128xf32, #tpu.memory_space<vmem>>, vector<1x128xf32>
    %28 = vector.broadcast %27 : vector<1x128xf32> to vector<16x128xf32>
    %29 = arith.addf %26, %28 : vector<16x128xf32>
    %30 = arith.negf %29 : vector<16x128xf32>
    %31 = math.exp %30 : vector<16x128xf32>
    %cst_23 = arith.constant 1.000000e+00 : f32
    %32 = vector.broadcast %cst_23 : f32 to vector<16x128xf32>
    %33 = arith.addf %32, %31 : vector<16x128xf32>
    %34 = arith.divf %32, %33 : vector<16x128xf32>
    %c0_24 = arith.constant 0 : index
    %c0_25 = arith.constant 0 : index
    %35 = vector.load %arg10[%c0_24, %c0_25] : memref<16x128xf32, #tpu.memory_space<vmem>>, vector<16x128xf32>
    tpu.vector_store %arg10[%c0_24, %c0_25], %34 {strides = array<i32>} : memref<16x128xf32, #tpu.memory_space<vmem>>, vector<16x128xf32>,
    return
  }
  func.func @transform_0(%arg0: i32) -> (i32, i32) {
    %c0_i32 = arith.constant 0 : i32
    %c0_i32_0 = arith.constant 0 : i32
    return %arg0, %c0_i32 : i32, i32
  }
  func.func @transform_1(%arg0: i32) -> (i32, i32) {
    %c0_i32 = arith.constant 0 : i32
    %c0_i32_0 = arith.constant 0 : i32
    %c0_i32_1 = arith.constant 0 : i32
    return %c0_i32, %c0_i32_0 : i32, i32
  }
  func.func @transform_2(%arg0: i32) -> (i32, i32) {
    %c0_i32 = arith.constant 0 : i32
    %c0_i32_0 = arith.constant 0 : i32
    %c0_i32_1 = arith.constant 0 : i32
    return %c0_i32, %c0_i32_0 : i32, i32
  }
  func.func @transform_3(%arg0: i32) -> (i32, i32) {
    %c0_i32 = arith.constant 0 : i32
    %c0_i32_0 = arith.constant 0 : i32
    %c0_i32_1 = arith.constant 0 : i32
    return %c0_i32, %c0_i32_0 : i32, i32
  }
  func.func @transform_4(%arg0: i32) -> (i32, i32) {
    %c0_i32 = arith.constant 0 : i32
    %c0_i32_0 = arith.constant 0 : i32
    %c0_i32_1 = arith.constant 0 : i32
    return %c0_i32, %c0_i32_0 : i32, i32
  }
  func.func @transform_5(%arg0: i32) -> (i32, i32) {
    %c0_i32 = arith.constant 0 : i32
    %c0_i32_0 = arith.constant 0 : i32
    %c0_i32_1 = arith.constant 0 : i32
    return %c0_i32, %c0_i32_0 : i32, i32
  }
  func.func @transform_6(%arg0: i32) -> (i32, i32) {
    %c0_i32 = arith.constant 0 : i32
    %c0_i32_0 = arith.constant 0 : i32
    %c0_i32_1 = arith.constant 0 : i32
    return %c0_i32, %c0_i32_0 : i32, i32
  }
  func.func @transform_7(%arg0: i32) -> (i32, i32) {
    %c0_i32 = arith.constant 0 : i32
    %c0_i32_0 = arith.constant 0 : i32
    %c0_i32_1 = arith.constant 0 : i32
    return %c0_i32, %c0_i32_0 : i32, i32
  }
  func.func @transform_8(%arg0: i32) -> (i32, i32) {
    %c0_i32 = arith.constant 0 : i32
    %c0_i32_0 = arith.constant 0 : i32
    %c0_i32_1 = arith.constant 0 : i32
    return %c0_i32, %c0_i32_0 : i32, i32
  }
  func.func @transform_9(%arg0: i32) -> (i32, i32) {
    %c0_i32 = arith.constant 0 : i32
    %c0_i32_0 = arith.constant 0 : i32
    return %arg0, %c0_i32 : i32, i32
  }
}

</mosaic_0001>

<llo_original>
// kernel: tpu_custom_call.1
$region0: #{tpu_custom_call.1}
  #allocation0 [shape = 'u32[]', space=smem, size = 0x4, offset = 0x4, fixed_abs, tag = 'smem constant byte address 0x4 - core index']
  #allocation1 [shape = 'u32[144,128]{1,0:T(1,128)}', space=vmem, size = 0x12000, scoped, tag = 'internal scratch']
  %s0 = inlined_call_operand.hbm [shape: bf16[64,128], index: 0, kind: input, shape index: {}]
  %s1 = inlined_call_operand.hbm [shape: bf16[128,128], index: 1, kind: input, shape index: {}]
  %s2 = inlined_call_operand.vmem [shape: f32[1,128], index: 2, kind: input, shape index: {}]
  %s3 = inlined_call_operand.hbm [shape: bf16[128,256], index: 3, kind: input, shape index: {}]
  %s4 = inlined_call_operand.vmem [shape: f32[1,256], index: 4, kind: input, shape index: {}]
  %s5 = inlined_call_operand.hbm [shape: bf16[256,128], index: 5, kind: input, shape index: {}]
  %s6 = inlined_call_operand.vmem [shape: f32[1,128], index: 6, kind: input, shape index: {}]
  %s7 = inlined_call_operand.hbm [shape: bf16[128,128], index: 7, kind: input, shape index: {}]
  %s8 = inlined_call_operand.vmem [shape: f32[1,128], index: 8, kind: input, shape index: {}]
  %s9 = inlined_call_operand.hbm [shape: f32[64,128], index: 9, kind: output, shape index: {}]
  %s10 = sld [smem:[#allocation0]]
  $region89: #{tpu_custom_call.1} parent=0
    _
  %s12 = ssub.s32 1, %s10
  %s13 = scalar_select 0, %s12, %s10
  $region1: #{tpu_custom_call.1} parent=0
    #allocation2 [shape = 'u8[8192]{0}', space=vmem, size = 0x2000, scoped, tag = 'input window, operand 0']
    #allocation3 [shape = 's32[2]{0}', space=sflag, size = 0x8, scoped, tag = 'scoped memory for tpu_custom_call.1']
    #allocation4 [shape = 's32[2]{0}', space=sflag, size = 0x8, scoped, tag = 'scoped memory for tpu_custom_call.1']
    #allocation5 [shape = 'u8[32768]{0}', space=vmem, size = 0x8000, scoped, tag = 'input window, operand 1, single buffered']
    #allocation6 [shape = 's32[1]{0}', space=sflag, size = 0x4, scoped, tag = 'scoped memory for tpu_custom_call.1']
    #allocation7 [shape = 'u8[65536]{0}', space=vmem, size = 0x10000, scoped, tag = 'input window, operand 3, single buffered']
    #allocation8 [shape = 'u8[65536]{0}', space=vmem, size = 0x10000, scoped, tag = 'input window, operand 5, single buffered']
    #allocation9 [shape = 's32[1]{0}', space=sflag, size = 0x4, scoped, tag = 'scoped memory for tpu_custom_call.1']
    #allocation10 [shape = 'u8[32768]{0}', space=vmem, size = 0x8000, scoped, tag = 'input window, operand 7, single buffered']
    #allocation11 [shape = 'u8[16384]{0}', space=vmem, size = 0x4000, scoped, tag = 'output window, operand 0']
    %14 = vsyncpa [#allocation3], 0
    %s15 = scalar_lea.sflag [#allocation3], 1
    %16 = vsyncpa %s15, 0
    %17 = vsyncpa [#allocation6], 0
    %18 = vsyncpa [#allocation9], 0
    %19 = vsyncpa [#allocation4], 0
    %s20 = scalar_lea.sflag [#allocation4], 1
    %21 = vsyncpa %s20, 0
    loop: start=0, step=1, limit=6
    $region2: #{tpu_custom_call.1} parent=1 // loop_pre_header
      _
    $region3: #{tpu_custom_call.1} parent=1 // loop_header
      %s23 = sphi 0, %s27
      %p24 = scmp.ge.s32.totalorder %s23, 6
      %s33 = sphi 0, %s35
      %s36 = sphi 0, %s33
      %s37 = sphi 0, %s36
      %s53 = sphi 0, %s37
      %s57 = sphi 0, %s57
      %s59 = sphi 0, %s57
      %s60 = sphi 0, %s59
      %s74 = sphi 0, %s60
      %s78 = sphi 0, %s78
      %s80 = sphi 0, %s78
      %s81 = sphi 0, %s80
      %s95 = sphi 0, %s81
      %s99 = sphi 0, %s99
      %s101 = sphi 0, %s99
      %s102 = sphi 0, %s101
      %s116 = sphi 0, %s102
      %s120 = sphi 0, %s120
      %s122 = sphi 0, %s120
      %s123 = sphi 0, %s122
      %s137 = sphi 0, %s123
      %s141 = sphi 0, %s141
      %s143 = sphi 0, %s141
      %s144 = sphi 0, %s143
      %s158 = sphi 0, %s144
      %s162 = sphi 0, %s162
      %s164 = sphi 0, %s162
      %s165 = sphi 0, %s164
      %s179 = sphi 0, %s165
      %s183 = sphi 0, %s183
      %s185 = sphi 0, %s183
      %s186 = sphi 0, %s185
      %s200 = sphi 0, %s186
      %s204 = sphi 0, %s204
      %s206 = sphi 0, %s204
      %s207 = sphi 0, %s206
      %s221 = sphi 0, %s207
      %s227 = sphi 0, %s229
      %s230 = sphi 0, %s227
      %s231 = sphi 0, %s230
      %s247 = sphi 0, %s231
    $region4: #{tpu_custom_call.1} parent=1 // loop_header_branch
      %26 = sbr.rel (%p24) target = $region8
    $region5: #{tpu_custom_call.1} parent=1 // loop_body
      %s28 = ssub.s32 %s23, 1
      %s29 = ssub.s32 %s23, 2
      %s30 = sadd.s32 %s23, 1
      %s31 = ssub.s32 %s23, %s30
      %p32 = scmp.eq.s32.totalorder %s31, 0
      %s34 = sadd.s32 %s33, 1
      %s35 = scalar_select %p32, %s33, %s34
      %p38 = pneg %p32
      %p39 = scmp.eq.s32.totalorder %s23, 3
      %p40 = por %p38, %p39
      %p41 = scmp.ne.s32.totalorder %s33, %s36
      %p42 = scmp.eq.s32.totalorder %s23, 0
      %p43 = por %p41, %p42
      %p44 = scmp.ne.s32.totalorder %s33, %s36
      %p45 = scmp.eq.s32.totalorder %s28, 3
      %p46 = por %p44, %p45
      %p47 = scmp.ne.s32.totalorder %s36, %s37
      %p48 = scmp.eq.s32.totalorder %s28, 0
      %p49 = por %p47, %p48
      %p50 = scmp.ne.s32.totalorder %s36, %s37
      %p51 = scmp.eq.s32.totalorder %s29, 3
      %p52 = por %p50, %p51
      %p54 = scmp.ne.s32.totalorder %s37, %s53
      %p55 = scmp.eq.s32.totalorder %s29, 0
      %p56 = por %p54, %p55
      %s58 = sadd.s32 %s57, 1
      %p61 = scmp.eq.s32.totalorder %s23, 3
      %p62 = scmp.ne.s32.totalorder %s57, %s59
      %p63 = scmp.eq.s32.totalorder %s23, 0
      %p64 = por %p62, %p63
      %p65 = scmp.ne.s32.totalorder %s57, %s59
      %p66 = scmp.eq.s32.totalorder %s28, 3
      %p67 = por %p65, %p66
      %p68 = scmp.ne.s32.totalorder %s59, %s60
      %p69 = scmp.eq.s32.totalorder %s28, 0
      %p70 = por %p68, %p69
      %p71 = scmp.ne.s32.totalorder %s59, %s60
      %p72 = scmp.eq.s32.totalorder %s29, 3
      %p73 = por %p71, %p72
      %p75 = scmp.ne.s32.totalorder %s60, %s74
      %p76 = scmp.eq.s32.totalorder %s29, 0
      %p77 = por %p75, %p76
      %s79 = sadd.s32 %s78, 1
      %p82 = scmp.eq.s32.totalorder %s23, 3
      %p83 = scmp.ne.s32.totalorder %s78, %s80
      %p84 = scmp.eq.s32.totalorder %s23, 0
      %p85 = por %p83, %p84
      %p86 = scmp.ne.s32.totalorder %s78, %s80
      %p87 = scmp.eq.s32.totalorder %s28, 3
      %p88 = por %p86, %p87
      %p89 = scmp.ne.s32.totalorder %s80, %s81
      %p90 = scmp.eq.s32.totalorder %s28, 0
      %p91 = por %p89, %p90
      %p92 = scmp.ne.s32.totalorder %s80, %s81
      %p93 = scmp.eq.s32.totalorder %s29, 3
      %p94 = por %p92, %p93
      %p96 = scmp.ne.s32.totalorder %s81, %s95
      %p97 = scmp.eq.s32.totalorder %s29, 0
      %p98 = por %p96, %p97
      %s100 = sadd.s32 %s99, 1
      %p103 = scmp.eq.s32.totalorder %s23, 3
      %p104 = scmp.ne.s32.totalorder %s99, %s101
      %p105 = scmp.eq.s32.totalorder %s23, 0
      %p106 = por %p104, %p105
      %p107 = scmp.ne.s32.totalorder %s99, %s101
      %p108 = scmp.eq.s32.totalorder %s28, 3
      %p109 = por %p107, %p108
      %p110 = scmp.ne.s32.totalorder %s101, %s102
      %p111 = scmp.eq.s32.totalorder %s28, 0
      %p112 = por %p110, %p111
      %p113 = scmp.ne.s32.totalorder %s101, %s102
      %p114 = scmp.eq.s32.totalorder %s29, 3
      %p115 = por %p113, %p114
      %p117 = scmp.ne.s32.totalorder %s102, %s116
      %p118 = scmp.eq.s32.totalorder %s29, 0
      %p119 = por %p117, %p118
      %s121 = sadd.s32 %s120, 1
      %p124 = scmp.eq.s32.totalorder %s23, 3
      %p125 = scmp.ne.s32.totalorder %s120, %s122
      %p126 = scmp.eq.s32.totalorder %s23, 0
      %p127 = por %p125, %p126
      %p128 = scmp.ne.s32.totalorder %s120, %s122
      %p129 = scmp.eq.s32.totalorder %s28, 3
      %p130 = por %p128, %p129
      %p131 = scmp.ne.s32.totalorder %s122, %s123
      %p132 = scmp.eq.s32.totalorder %s28, 0
      %p133 = por %p131, %p132
      %p134 = scmp.ne.s32.totalorder %s122, %s123
      %p135 = scmp.eq.s32.totalorder %s29, 3
      %p136 = por %p134, %p135
      %p138 = scmp.ne.s32.totalorder %s123, %s137
      %p139 = scmp.eq.s32.totalorder %s29, 0
      %p140 = por %p138, %p139
      %s142 = sadd.s32 %s141, 1
      %p145 = scmp.eq.s32.totalorder %s23, 3
      %p146 = scmp.ne.s32.totalorder %s141, %s143
      %p147 = scmp.eq.s32.totalorder %s23, 0
      %p148 = por %p146, %p147
      %p149 = scmp.ne.s32.totalorder %s141, %s143
      %p150 = scmp.eq.s32.totalorder %s28, 3
      %p151 = por %p149, %p150
      %p152 = scmp.ne.s32.totalorder %s143, %s144
      %p153 = scmp.eq.s32.totalorder %s28, 0
      %p154 = por %p152, %p153
      %p155 = scmp.ne.s32.totalorder %s143, %s144
      %p156 = scmp.eq.s32.totalorder %s29, 3
      %p157 = por %p155, %p156
      %p159 = scmp.ne.s32.totalorder %s144, %s158
      %p160 = scmp.eq.s32.totalorder %s29, 0
      %p161 = por %p159, %p160
      %s163 = sadd.s32 %s162, 1
      %p166 = scmp.eq.s32.totalorder %s23, 3
      %p167 = scmp.ne.s32.totalorder %s162, %s164
      %p168 = scmp.eq.s32.totalorder %s23, 0
      %p169 = por %p167, %p168
      %p170 = scmp.ne.s32.totalorder %s162, %s164
      %p171 = scmp.eq.s32.totalorder %s28, 3
      %p172 = por %p170, %p171
      %p173 = scmp.ne.s32.totalorder %s164, %s165
      %p174 = scmp.eq.s32.totalorder %s28, 0
      %p175 = por %p173, %p174
      %p176 = scmp.ne.s32.totalorder %s164, %s165
      %p177 = scmp.eq.s32.totalorder %s29, 3
      %p178 = por %p176, %p177
      %p180 = scmp.ne.s32.totalorder %s165, %s179
      %p181 = scmp.eq.s32.totalorder %s29, 0
      %p182 = por %p180, %p181
      %s184 = sadd.s32 %s183, 1
      %p187 = scmp.eq.s32.totalorder %s23, 3
      %p188 = scmp.ne.s32.totalorder %s183, %s185
      %p189 = scmp.eq.s32.totalorder %s23, 0
      %p190 = por %p188, %p189
      %p191 = scmp.ne.s32.totalorder %s183, %s185
      %p192 = scmp.eq.s32.totalorder %s28, 3
      %p193 = por %p191, %p192
      %p194 = scmp.ne.s32.totalorder %s185, %s186
      %p195 = scmp.eq.s32.totalorder %s28, 0
      %p196 = por %p194, %p195
      %p197 = scmp.ne.s32.totalorder %s185, %s186
      %p198 = scmp.eq.s32.totalorder %s29, 3
      %p199 = por %p197, %p198
      %p201 = scmp.ne.s32.totalorder %s186, %s200
      %p202 = scmp.eq.s32.totalorder %s29, 0
      %p203 = por %p201, %p202
      %s205 = sadd.s32 %s204, 1
      %p208 = scmp.eq.s32.totalorder %s23, 3
      %p209 = scmp.ne.s32.totalorder %s204, %s206
      %p210 = scmp.eq.s32.totalorder %s23, 0
      %p211 = por %p209, %p210
      %p212 = scmp.ne.s32.totalorder %s204, %s206
      %p213 = scmp.eq.s32.totalorder %s28, 3
      %p214 = por %p212, %p213
      %p215 = scmp.ne.s32.totalorder %s206, %s207
      %p216 = scmp.eq.s32.totalorder %s28, 0
      %p217 = por %p215, %p216
      %p218 = scmp.ne.s32.totalorder %s206, %s207
      %p219 = scmp.eq.s32.totalorder %s29, 3
      %p220 = por %p218, %p219
      %p222 = scmp.ne.s32.totalorder %s207, %s221
      %p223 = scmp.eq.s32.totalorder %s29, 0
      %p224 = por %p222, %p223
      %s225 = ssub.s32 %s23, %s30
      %p226 = scmp.eq.s32.totalorder %s225, 0
      %s228 = sadd.s32 %s227, 1
      %s229 = scalar_select %p226, %s227, %s228
      %p232 = pneg %p226
      %p233 = scmp.eq.s32.totalorder %s23, 3
      %p234 = por %p232, %p233
      %p235 = scmp.ne.s32.totalorder %s227, %s230
      %p236 = scmp.eq.s32.totalorder %s23, 0
      %p237 = por %p235, %p236
      %p238 = scmp.ne.s32.totalorder %s227, %s230
      %p239 = scmp.eq.s32.totalorder %s28, 3
      %p240 = por %p238, %p239
      %p241 = scmp.ne.s32.totalorder %s230, %s231
      %p242 = scmp.eq.s32.totalorder %s28, 0
      %p243 = por %p241, %p242
      %p244 = scmp.ne.s32.totalorder %s230, %s231
      %p245 = scmp.eq.s32.totalorder %s29, 3
      %p246 = por %p244, %p245
      %p248 = scmp.ne.s32.totalorder %s231, %s247
      %p249 = scmp.eq.s32.totalorder %s29, 0
      %p250 = por %p248, %p249
      %p251 = scmp.le.s32.totalorder 1, %s23
      %p252 = scmp.lt.s32.totalorder %s23, 5
      %p253 = pnand %p251, %p252
      %p254 = pneg %p253
      // Predicated region
      $region9: #{tpu_custom_call.1} parent=5 // pred_check
        _
      $region10: #{tpu_custom_call.1} parent=5 // pred_check_branch
        %256 = sbr.rel (%p253) target = $region12
      $region11: #{tpu_custom_call.1} parent=5 // pred_region
        %s257 = ssub.s32 %s23, 1
        // Predicated region
        $region13: #{tpu_custom_call.1} parent=11 // pred_check
          %p258 = pneg %p70
        $region14: #{tpu_custom_call.1} parent=11 // pred_check_branch
          %260 = sbr.rel (%p258) target = $region16
        $region15: #{tpu_custom_call.1} parent=11 // pred_region
          %s262 = ssub.s32 1024, 1024
          %263 = vsyncadd [#allocation6], %s262
          %s264 = sshll.u32 [#allocation5], 4
          %s265 = int_to_ptr.vmem [resolvable:$true] %s264
          %270 = dma.hbm_to_vmem [thread:$0]  %s1, 1024, %s265, [#allocation6], 64, 64, 4
        $region16: #{tpu_custom_call.1} parent=11 // pred_fallthru
          _
        // Predicated region
        $region17: #{tpu_custom_call.1} parent=11 // pred_check
          %p271 = pneg %p91
        $region18: #{tpu_custom_call.1} parent=11 // pred_check_branch
          %273 = sbr.rel (%p271) target = $region20
        $region19: #{tpu_custom_call.1} parent=11 // pred_region
          _
        $region20: #{tpu_custom_call.1} parent=11 // pred_fallthru
          _
        // Predicated region
        $region21: #{tpu_custom_call.1} parent=11 // pred_check
          %p274 = pneg %p112
        $region22: #{tpu_custom_call.1} parent=11 // pred_check_branch
          %276 = sbr.rel (%p274) target = $region24
        $region23: #{tpu_custom_call.1} parent=11 // pred_region
          %s278 = ssub.s32 2048, 2048
          %279 = vsyncadd [#allocation6], %s278
          %s280 = sshll.u32 [#allocation7], 4
          %s281 = int_to_ptr.vmem [resolvable:$true] %s280
          %286 = dma.hbm_to_vmem [thread:$0]  %s3, 2048, %s281, [#allocation6], 128, 128, 8
        $region24: #{tpu_custom_call.1} parent=11 // pred_fallthru
          _
        // Predicated region
        $region25: #{tpu_custom_call.1} parent=11 // pred_check
          %p287 = pneg %p133
        $region26: #{tpu_custom_call.1} parent=11 // pred_check_branch
          %289 = sbr.rel (%p287) target = $region28
        $region27: #{tpu_custom_call.1} parent=11 // pred_region
          _
        $region28: #{tpu_custom_call.1} parent=11 // pred_fallthru
          _
        // Predicated region
        $region29: #{tpu_custom_call.1} parent=11 // pred_check
          %p290 = pneg %p154
        $region30: #{tpu_custom_call.1} parent=11 // pred_check_branch
          %292 = sbr.rel (%p290) target = $region32
        $region31: #{tpu_custom_call.1} parent=11 // pred_region
          %s294 = ssub.s32 2048, 2048
          %295 = vsyncadd [#allocation9], %s294
          %s296 = sshll.u32 [#allocation8], 4
          %s297 = int_to_ptr.vmem [resolvable:$true] %s296
          %302 = dma.hbm_to_vmem [thread:$0]  %s5, 2048, %s297, [#allocation9], 64, 64, 4
        $region32: #{tpu_custom_call.1} parent=11 // pred_fallthru
          _
        // Predicated region
        $region33: #{tpu_custom_call.1} parent=11 // pred_check
          %p303 = pneg %p175
        $region34: #{tpu_custom_call.1} parent=11 // pred_check_branch
          %305 = sbr.rel (%p303) target = $region36
        $region35: #{tpu_custom_call.1} parent=11 // pred_region
          _
        $region36: #{tpu_custom_call.1} parent=11 // pred_fallthru
          _
        // Predicated region
        $region37: #{tpu_custom_call.1} parent=11 // pred_check
          %p306 = pneg %p196
        $region38: #{tpu_custom_call.1} parent=11 // pred_check_branch
          %308 = sbr.rel (%p306) target = $region40
        $region39: #{tpu_custom_call.1} parent=11 // pred_region
          %s310 = ssub.s32 1024, 1024
          %311 = vsyncadd [#allocation9], %s310
          %s312 = sshll.u32 [#allocation10], 4
          %s313 = int_to_ptr.vmem [resolvable:$true] %s312
          %318 = dma.hbm_to_vmem [thread:$0]  %s7, 1024, %s313, [#allocation9], 64, 64, 4
        $region40: #{tpu_custom_call.1} parent=11 // pred_fallthru
          _
        // Predicated region
        $region41: #{tpu_custom_call.1} parent=11 // pred_check
          %p319 = pneg %p217
        $region42: #{tpu_custom_call.1} parent=11 // pred_check_branch
          %321 = sbr.rel (%p319) target = $region44
        $region43: #{tpu_custom_call.1} parent=11 // pred_region
          _
        $region44: #{tpu_custom_call.1} parent=11 // pred_fallthru
          _
      $region12: #{tpu_custom_call.1} parent=5 // pred_fallthru
        _
      %p322 = scmp.lt.s32.totalorder %s23, 4
      // Predicated region
      $region45: #{tpu_custom_call.1} parent=5 // pred_check
        %p323 = pneg %p322
      $region46: #{tpu_custom_call.1} parent=5 // pred_check_branch
        %325 = sbr.rel (%p323) target = $region48
      $region47: #{tpu_custom_call.1} parent=5 // pred_region
        // Predicated region
        $region49: #{tpu_custom_call.1} parent=47 // pred_check
          %p326 = pneg %p43
        $region50: #{tpu_custom_call.1} parent=47 // pred_check_branch
          %328 = sbr.rel (%p326) target = $region52
        $region51: #{tpu_custom_call.1} parent=47 // pred_region
          %s329 = sand.u32 %s33, 1
          %s330 = scalar_lea.sflag [#allocation3], %s329
          %s331 = sand.u32 %s33, 1
          %s332 = smul.addr %s331, 8
          %s333 = scalar_lea.vmem [#allocation2], %s332
          %s334 = smul.u32 2, %s23
          %s336 = ssub.s32 128, 128
          %337 = vsyncadd %s330, %s336
          %s338 = smul.addr %s334, 64
          %s339 = scalar_lea.hbm %s0, %s338
          %s340 = sshll.u32 %s333, 4
          %s341 = int_to_ptr.vmem [resolvable:$true] %s340
          %346 = dma.hbm_to_vmem [thread:$0]  %s339, 128, %s341, %s330, 64, 64, 4
        $region52: #{tpu_custom_call.1} parent=47 // pred_fallthru
          _
      $region48: #{tpu_custom_call.1} parent=5 // pred_fallthru
        _
      %p347 = scmp.le.s32.totalorder 1, %s23
      %p348 = scmp.lt.s32.totalorder %s23, 5
      %p349 = pnand %p347, %p348
      %p350 = pneg %p349
      // Predicated region
      $region53: #{tpu_custom_call.1} parent=5 // pred_check
        _
      $region54: #{tpu_custom_call.1} parent=5 // pred_check_branch
        %352 = sbr.rel (%p349) target = $region56
      $region55: #{tpu_custom_call.1} parent=5 // pred_region
        %s353 = ssub.s32 %s23, 1
        %s354 = sand.u32 %s36, 1
        %s355 = scalar_lea.sflag [#allocation3], %s354
        %s356 = sand.u32 %s36, 1
        %s357 = smul.addr %s356, 8
        %s358 = scalar_lea.vmem [#allocation2], %s357
        // Predicated region
        $region57: #{tpu_custom_call.1} parent=55 // pred_check
          %p359 = pneg %p49
        $region58: #{tpu_custom_call.1} parent=55 // pred_check_branch
          %361 = sbr.rel (%p359) target = $region60
        $region59: #{tpu_custom_call.1} parent=55 // pred_region
          %362 = dma.done %s355, 128
        $region60: #{tpu_custom_call.1} parent=55 // pred_fallthru
          _
        // Predicated region
        $region61: #{tpu_custom_call.1} parent=55 // pred_check
          %p363 = pneg %p70
        $region62: #{tpu_custom_call.1} parent=55 // pred_check_branch
          %365 = sbr.rel (%p363) target = $region64
        $region63: #{tpu_custom_call.1} parent=55 // pred_region
          %366 = dma.done [#allocation6], 1024
        $region64: #{tpu_custom_call.1} parent=55 // pred_fallthru
          _
        // Predicated region
        $region65: #{tpu_custom_call.1} parent=55 // pred_check
          %p367 = pneg %p112
        $region66: #{tpu_custom_call.1} parent=55 // pred_check_branch
          %369 = sbr.rel (%p367) target = $region68
        $region67: #{tpu_custom_call.1} parent=55 // pred_region
          %370 = dma.done [#allocation6], 2048
        $region68: #{tpu_custom_call.1} parent=55 // pred_fallthru
          _
        // Predicated region
        $region69: #{tpu_custom_call.1} parent=55 // pred_check
          %p371 = pneg %p154
        $region70: #{tpu_custom_call.1} parent=55 // pred_check_branch
          %373 = sbr.rel (%p371) target = $region72
        $region71: #{tpu_custom_call.1} parent=55 // pred_region
          %374 = dma.done [#allocation9], 2048
        $region72: #{tpu_custom_call.1} parent=55 // pred_fallthru
          _
        // Predicated region
        $region73: #{tpu_custom_call.1} parent=55 // pred_check
          %p375 = pneg %p196
        $region74: #{tpu_custom_call.1} parent=55 // pred_check_branch
          %377 = sbr.rel (%p375) target = $region76
        $region75: #{tpu_custom_call.1} parent=55 // pred_region
          %378 = dma.done [#allocation9], 1024
        $region76: #{tpu_custom_call.1} parent=55 // pred_fallthru
          _
        %s379 = sand.u32 %s36, 1
        %s380 = scalar_lea.sflag [#allocation3], %s379
        %s381 = sand.u32 %s36, 1
        %s382 = smul.addr %s381, 8
        %s383 = scalar_lea.vmem [#allocation2], %s382
        %p384 = pneg %p49
        %p385 = pneg %p46
        %p386 = pneg %p70
        %p387 = pneg %p67
        %p388 = pneg %p91
        %p389 = pneg %p88
        %p390 = pneg %p112
        %p391 = pneg %p109
        %p392 = pneg %p133
        %p393 = pneg %p130
        %p394 = pneg %p154
        %p395 = pneg %p151
        %p396 = pneg %p175
        %p397 = pneg %p172
        %p398 = pneg %p196
        %p399 = pneg %p193
        %p400 = pneg %p217
        %p401 = pneg %p214
        %p402 = pneg %p243
        %p403 = pneg %p240
        %s404 = sand.u32 %s230, 1
        %s405 = scalar_lea.sflag [#allocation4], %s404
        %s406 = sand.u32 %s230, 1
        %s407 = smul.addr %s406, 16
        %s408 = scalar_lea.vmem [#allocation11], %s407
        %s409 = smul.u32 2, %s28
        %s410 = smul.u32 2, %s28
        %v412 = vld [vmem:[%s358] sm:$0xf]
        %v413 = vld [vmem:[%s358 + $0x4] sm:$0xf]
        %v414 = vld [vmem:[#allocation5] sm:$0xf]
        %v415 = vld [vmem:[#allocation5 + $0x4] sm:$0xf]
        %v416 = vld [vmem:[#allocation5 + $0x8] sm:$0xf]
        %v417 = vld [vmem:[#allocation5 + $0xc] sm:$0xf]
        %v418 = vld [vmem:[#allocation5 + $0x10] sm:$0xf]
        %v419 = vld [vmem:[#allocation5 + $0x14] sm:$0xf]
        %v420 = vld [vmem:[#allocation5 + $0x18] sm:$0xf]
        %v421 = vld [vmem:[#allocation5 + $0x1c] sm:$0xf]
        %v422 = vld [vmem:[#allocation5 + $0x20] sm:$0xf]
        %v423 = vld [vmem:[#allocation5 + $0x24] sm:$0xf]
        %v424 = vld [vmem:[#allocation5 + $0x28] sm:$0xf]
        %v425 = vld [vmem:[#allocation5 + $0x2c] sm:$0xf]
        %v426 = vld [vmem:[#allocation5 + $0x30] sm:$0xf]
        %v427 = vld [vmem:[#allocation5 + $0x34] sm:$0xf]
        %v428 = vld [vmem:[#allocation5 + $0x38] sm:$0xf]
        %v429 = vld [vmem:[#allocation5 + $0x3c] sm:$0xf]
        %v430 = vld [vmem:[%s2] sm:$0x1]
        %v432 = vlaneseq
        %v433 = vshrl.u32 %v432, 7
        %v434 = vsub.s32 0, %v433
        %v435 = vrot.slane %v430, %v434
        %v439 = vunpack.c.l.b16 %v412
        %v440 = vunpack.c.l.b16 %v413
        %v441 = vpack.c.b16 %v440, %v439
        %v459 = vunpack.c.l.b16 %v414
        %v460 = vunpack.c.l.b16 %v415
        %v461 = vunpack.c.l.b16 %v416
        %v462 = vunpack.c.l.b16 %v417
        %v463 = vunpack.c.l.b16 %v418
        %v464 = vunpack.c.l.b16 %v419
        %v465 = vunpack.c.l.b16 %v420
        %v466 = vunpack.c.l.b16 %v421
        %v467 = vunpack.c.l.b16 %v422
        %v468 = vunpack.c.l.b16 %v423
        %v469 = vunpack.c.l.b16 %v424
        %v470 = vunpack.c.l.b16 %v425
        %v471 = vunpack.c.l.b16 %v426
        %v472 = vunpack.c.l.b16 %v427
        %v473 = vunpack.c.l.b16 %v428
        %v474 = vunpack.c.l.b16 %v429
        %v475 = vpack.c.b16 %v460, %v459
        %v476 = vpack.c.b16 %v462, %v461
        %v477 = vpack.c.b16 %v464, %v463
        %v478 = vpack.c.b16 %v466, %v465
        %v479 = vpack.c.b16 %v468, %v467
        %v480 = vpack.c.b16 %v470, %v469
        %v481 = vpack.c.b16 %v472, %v471
        %v482 = vpack.c.b16 %v474, %v473
        %491 = vmatprep.subr.bf16.mxu0 0
        %492 = vmatpush1.bf16.msra.mxu0 %v475
        %493 = vmatprep.subr.bf16.mxu0 0
        %494 = vmatpush1.bf16.msra.mxu0 %v476
        %495 = vmatprep.subr.bf16.mxu0 0
        %496 = vmatpush1.bf16.msra.mxu0 %v477
        %497 = vmatprep.subr.bf16.mxu0 0
        %498 = vmatpush1.bf16.msra.mxu0 %v478
        %499 = vmatprep.subr.bf16.mxu0 0
        %500 = vmatpush1.bf16.msra.mxu0 %v479
        %501 = vmatprep.subr.bf16.mxu0 0
        %502 = vmatpush1.bf16.msra.mxu0 %v480
        %503 = vmatprep.subr.bf16.mxu0 0
        %504 = vmatpush1.bf16.msra.mxu0 %v481
        %505 = vmatprep.subr.bf16.mxu0 0
        %506 = vmatpush1.bf16.msra.mxu0 %v482
        %507 = vmatprep.subr.bf16.mxu0 0
        %508 = vmatpush1.bf16.msra.mxu0 0
        %509 = vmatprep.subr.bf16.mxu0 0
        %510 = vmatpush1.bf16.msra.mxu0 0
        %511 = vmatprep.subr.bf16.mxu0 0
        %512 = vmatpush1.bf16.msra.mxu0 0
        %513 = vmatprep.subr.bf16.mxu0 0
        %514 = vmatpush1.bf16.msra.mxu0 0
        %515 = vmatprep.subr.bf16.mxu0 0
        %516 = vmatpush1.bf16.msra.mxu0 0
        %517 = vmatprep.subr.bf16.mxu0 0
        %518 = vmatpush1.bf16.msra.mxu0 0
        %519 = vmatprep.subr.bf16.mxu0 0
        %520 = vmatpush1.bf16.msra.mxu0 0
        %521 = vmatprep.subr.bf16.mxu0 0
        %522 = vmatpush1.bf16.msra.mxu0 0
        %523 = vmatprep.mubr.bf16.mxu0 0
        %524 = vmatmul.mubr.bf16.gmra.mrb[0].mxu0 %v441
        %v525 = vpop.f32.mrb[0].mxu0
        %v526 = vadd.f32 %v435, %v525
        %v527 = vpop.f32.mrb[0].mxu0
        %v528 = vpop.f32.mrb[0].mxu0
        %v529 = vadd.f32 %v435, %v528
        %v530 = vpop.f32.mrb[0].mxu0
        %531 = vdwg.mxu0
        %v532 = vmax.f32 %v526, 0.0
        %v533 = vmax.f32 %v529, 0.0
        %v534 = vpack.c.bf16 %v533, %v532
        %v535 = vld [vmem:[#allocation7] sm:$0xff]
        %v536 = vld [vmem:[#allocation7 + $0x8] sm:$0xff]
        %v537 = vld [vmem:[#allocation7 + $0x10] sm:$0xff]
        %v538 = vld [vmem:[#allocation7 + $0x18] sm:$0xff]
        %v539 = vld [vmem:[#allocation7 + $0x20] sm:$0xff]
        %v540 = vld [vmem:[#allocation7 + $0x28] sm:$0xff]
        %v541 = vld [vmem:[#allocation7 + $0x30] sm:$0xff]
        %v542 = vld [vmem:[#allocation7 + $0x38] sm:$0xff]
        %v543 = vld [vmem:[#allocation7 + $0x40] sm:$0xff]
        %v544 = vld [vmem:[#allocation7 + $0x48] sm:$0xff]
        %v545 = vld [vmem:[#allocation7 + $0x50] sm:$0xff]
        %v546 = vld [vmem:[#allocation7 + $0x58] sm:$0xff]
        %v547 = vld [vmem:[#allocation7 + $0x60] sm:$0xff]
        %v548 = vld [vmem:[#allocation7 + $0x68] sm:$0xff]
        %v549 = vld [vmem:[#allocation7 + $0x70] sm:$0xff]
        %v550 = vld [vmem:[#allocation7 + $0x78] sm:$0xff]
        %v551 = vld [vmem:[%s4] sm:$0x3]
        %v553 = vlaneseq
        %v554 = vshrl.u32 %v553, 7
        %v555 = vsub.s32 0, %v554
        %v556 = vrot.slane %v551, %v555
        %v557 = vlaneseq
        %v558 = vshrl.u32 %v557, 7
        %v559 = vsub.s32 1, %v558
        %v560 = vrot.slane %v551, %v559
        %v579 = vunpack.c.l.b16 %v535
        %v580 = vunpack.c.h.b16 %v535
        %v581 = vunpack.c.l.b16 %v536
        %v582 = vunpack.c.h.b16 %v536
        %v583 = vunpack.c.l.b16 %v537
        %v584 = vunpack.c.h.b16 %v537
        %v585 = vunpack.c.l.b16 %v538
        %v586 = vunpack.c.h.b16 %v538
        %v587 = vunpack.c.l.b16 %v539
        %v588 = vunpack.c.h.b16 %v539
        %v589 = vunpack.c.l.b16 %v540
        %v590 = vunpack.c.h.b16 %v540
        %v591 = vunpack.c.l.b16 %v541
        %v592 = vunpack.c.h.b16 %v541
        %v593 = vunpack.c.l.b16 %v542
        %v594 = vunpack.c.h.b16 %v542
        %v595 = vunpack.c.l.b16 %v543
        %v596 = vunpack.c.h.b16 %v543
        %v597 = vunpack.c.l.b16 %v544
        %v598 = vunpack.c.h.b16 %v544
        %v599 = vunpack.c.l.b16 %v545
        %v600 = vunpack.c.h.b16 %v545
        %v601 = vunpack.c.l.b16 %v546
        %v602 = vunpack.c.h.b16 %v546
        %v603 = vunpack.c.l.b16 %v547
        %v604 = vunpack.c.h.b16 %v547
        %v605 = vunpack.c.l.b16 %v548
        %v606 = vunpack.c.h.b16 %v548
        %v607 = vunpack.c.l.b16 %v549
        %v608 = vunpack.c.h.b16 %v549
        %v609 = vunpack.c.l.b16 %v550
        %v610 = vunpack.c.h.b16 %v550
        %v611 = vpack.c.b16 %v581, %v579
        %v612 = vpack.c.b16 %v582, %v580
        %v613 = vpack.c.b16 %v585, %v583
        %v614 = vpack.c.b16 %v586, %v584
        %v615 = vpack.c.b16 %v589, %v587
        %v616 = vpack.c.b16 %v590, %v588
        %v617 = vpack.c.b16 %v593, %v591
        %v618 = vpack.c.b16 %v594, %v592
        %v619 = vpack.c.b16 %v597, %v595
        %v620 = vpack.c.b16 %v598, %v596
        %v621 = vpack.c.b16 %v601, %v599
        %v622 = vpack.c.b16 %v602, %v600
        %v623 = vpack.c.b16 %v605, %v603
        %v624 = vpack.c.b16 %v606, %v604
        %v625 = vpack.c.b16 %v609, %v607
        %v626 = vpack.c.b16 %v610, %v608
        %643 = vmatprep.subr.bf16.mxu0 %v612
        %644 = vmatpush1.bf16.msra.mxu0 %v611
        %645 = vmatprep.subr.bf16.mxu0 %v614
        %646 = vmatpush1.bf16.msra.mxu0 %v613
        %647 = vmatprep.subr.bf16.mxu0 %v616
        %648 = vmatpush1.bf16.msra.mxu0 %v615
        %649 = vmatprep.subr.bf16.mxu0 %v618
        %650 = vmatpush1.bf16.msra.mxu0 %v617
        %651 = vmatprep.subr.bf16.mxu0 %v620
        %652 = vmatpush1.bf16.msra.mxu0 %v619
        %653 = vmatprep.subr.bf16.mxu0 %v622
        %654 = vmatpush1.bf16.msra.mxu0 %v621
        %655 = vmatprep.subr.bf16.mxu0 %v624
        %656 = vmatpush1.bf16.msra.mxu0 %v623
        %657 = vmatprep.subr.bf16.mxu0 %v626
        %658 = vmatpush1.bf16.msra.mxu0 %v625
        %659 = vmatprep.subr.bf16.mxu0 0
        %660 = vmatpush1.bf16.msra.mxu0 0
        %661 = vmatprep.subr.bf16.mxu0 0
        %662 = vmatpush1.bf16.msra.mxu0 0
        %663 = vmatprep.subr.bf16.mxu0 0
        %664 = vmatpush1.bf16.msra.mxu0 0
        %665 = vmatprep.subr.bf16.mxu0 0
        %666 = vmatpush1.bf16.msra.mxu0 0
        %667 = vmatprep.subr.bf16.mxu0 0
        %668 = vmatpush1.bf16.msra.mxu0 0
        %669 = vmatprep.subr.bf16.mxu0 0
        %670 = vmatpush1.bf16.msra.mxu0 0
        %671 = vmatprep.subr.bf16.mxu0 0
        %672 = vmatpush1.bf16.msra.mxu0 0
        %673 = vmatprep.subr.bf16.mxu0 0
        %674 = vmatpush1.bf16.msra.mxu0 0
        %675 = vmatprep.mubr.bf16.mxu0 0
        %676 = vmatmul.mubr.bf16.gmra.mrb[0].mxu0 %v534
        %v677 = vpop.f32.mrb[0].mxu0
        %v678 = vadd.f32 %v556, %v677
        %v679 = vpop.f32.mrb[0].mxu0
        %v680 = vadd.f32 %v560, %v679
        %v681 = vpop.f32.mrb[0].mxu0
        %v682 = vadd.f32 %v556, %v681
        %v683 = vpop.f32.mrb[0].mxu0
        %v684 = vadd.f32 %v560, %v683
        %685 = vdwg.mxu0
        %v686 = vmax.f32 %v678, 0.0
        %v687 = vmax.f32 %v680, 0.0
        %v688 = vmax.f32 %v682, 0.0
        %v689 = vmax.f32 %v684, 0.0
        %v690 = vpack.c.bf16 %v688, %v686
        %v691 = vpack.c.bf16 %v689, %v687
        %v692 = vld [vmem:[#allocation8] sm:$0xf]
        %v693 = vld [vmem:[#allocation8 + $0x4] sm:$0xf]
        %v694 = vld [vmem:[#allocation8 + $0x8] sm:$0xf]
        %v695 = vld [vmem:[#allocation8 + $0xc] sm:$0xf]
        %v696 = vld [vmem:[#allocation8 + $0x10] sm:$0xf]
        %v697 = vld [vmem:[#allocation8 + $0x14] sm:$0xf]
        %v698 = vld [vmem:[#allocation8 + $0x18] sm:$0xf]
        %v699 = vld [vmem:[#allocation8 + $0x1c] sm:$0xf]
        %v700 = vld [vmem:[#allocation8 + $0x20] sm:$0xf]
        %v701 = vld [vmem:[#allocation8 + $0x24] sm:$0xf]
        %v702 = vld [vmem:[#allocation8 + $0x28] sm:$0xf]
        %v703 = vld [vmem:[#allocation8 + $0x2c] sm:$0xf]
        %v704 = vld [vmem:[#allocation8 + $0x30] sm:$0xf]
        %v705 = vld [vmem:[#allocation8 + $0x34] sm:$0xf]
        %v706 = vld [vmem:[#allocation8 + $0x38] sm:$0xf]
        %v707 = vld [vmem:[#allocation8 + $0x3c] sm:$0xf]
        %v708 = vld [vmem:[#allocation8 + $0x40] sm:$0xf]
        %v709 = vld [vmem:[#allocation8 + $0x44] sm:$0xf]
        %v710 = vld [vmem:[#allocation8 + $0x48] sm:$0xf]
        %v711 = vld [vmem:[#allocation8 + $0x4c] sm:$0xf]
        %v712 = vld [vmem:[#allocation8 + $0x50] sm:$0xf]
        %v713 = vld [vmem:[#allocation8 + $0x54] sm:$0xf]
        %v714 = vld [vmem:[#allocation8 + $0x58] sm:$0xf]
        %v715 = vld [vmem:[#allocation8 + $0x5c] sm:$0xf]
        %v716 = vld [vmem:[#allocation8 + $0x60] sm:$0xf]
        %v717 = vld [vmem:[#allocation8 + $0x64] sm:$0xf]
        %v718 = vld [vmem:[#allocation8 + $0x68] sm:$0xf]
        %v719 = vld [vmem:[#allocation8 + $0x6c] sm:$0xf]
        %v720 = vld [vmem:[#allocation8 + $0x70] sm:$0xf]
        %v721 = vld [vmem:[#allocation8 + $0x74] sm:$0xf]
        %v722 = vld [vmem:[#allocation8 + $0x78] sm:$0xf]
        %v723 = vld [vmem:[#allocation8 + $0x7c] sm:$0xf]
        %v724 = vld [vmem:[%s6] sm:$0x1]
        %v726 = vlaneseq
        %v727 = vshrl.u32 %v726, 7
        %v728 = vsub.s32 0, %v727
        %v729 = vrot.slane %v724, %v728
        %v763 = vunpack.c.l.b16 %v692
        %v764 = vunpack.c.l.b16 %v693
        %v765 = vunpack.c.l.b16 %v694
        %v766 = vunpack.c.l.b16 %v695
        %v767 = vunpack.c.l.b16 %v696
        %v768 = vunpack.c.l.b16 %v697
        %v769 = vunpack.c.l.b16 %v698
        %v770 = vunpack.c.l.b16 %v699
        %v771 = vunpack.c.l.b16 %v700
        %v772 = vunpack.c.l.b16 %v701
        %v773 = vunpack.c.l.b16 %v702
        %v774 = vunpack.c.l.b16 %v703
        %v775 = vunpack.c.l.b16 %v704
        %v776 = vunpack.c.l.b16 %v705
        %v777 = vunpack.c.l.b16 %v706
        %v778 = vunpack.c.l.b16 %v707
        %v779 = vunpack.c.l.b16 %v708
        %v780 = vunpack.c.l.b16 %v709
        %v781 = vunpack.c.l.b16 %v710
        %v782 = vunpack.c.l.b16 %v711
        %v783 = vunpack.c.l.b16 %v712
        %v784 = vunpack.c.l.b16 %v713
        %v785 = vunpack.c.l.b16 %v714
        %v786 = vunpack.c.l.b16 %v715
        %v787 = vunpack.c.l.b16 %v716
        %v788 = vunpack.c.l.b16 %v717
        %v789 = vunpack.c.l.b16 %v718
        %v790 = vunpack.c.l.b16 %v719
        %v791 = vunpack.c.l.b16 %v720
        %v792 = vunpack.c.l.b16 %v721
        %v793 = vunpack.c.l.b16 %v722
        %v794 = vunpack.c.l.b16 %v723
        %v795 = vpack.c.b16 %v764, %v763
        %v796 = vpack.c.b16 %v766, %v765
        %v797 = vpack.c.b16 %v768, %v767
        %v798 = vpack.c.b16 %v770, %v769
        %v799 = vpack.c.b16 %v772, %v771
        %v800 = vpack.c.b16 %v774, %v773
        %v801 = vpack.c.b16 %v776, %v775
        %v802 = vpack.c.b16 %v778, %v777
        %v803 = vpack.c.b16 %v780, %v779
        %v804 = vpack.c.b16 %v782, %v781
        %v805 = vpack.c.b16 %v784, %v783
        %v806 = vpack.c.b16 %v786, %v785
        %v807 = vpack.c.b16 %v788, %v787
        %v808 = vpack.c.b16 %v790, %v789
        %v809 = vpack.c.b16 %v792, %v791
        %v810 = vpack.c.b16 %v794, %v793
        %827 = vmatprep.subr.bf16.mxu0 0
        %828 = vmatpush1.bf16.msra.mxu0 %v795
        %829 = vmatprep.subr.bf16.mxu0 0
        %830 = vmatpush1.bf16.msra.mxu0 %v796
        %831 = vmatprep.subr.bf16.mxu0 0
        %832 = vmatpush1.bf16.msra.mxu0 %v797
        %833 = vmatprep.subr.bf16.mxu0 0
        %834 = vmatpush1.bf16.msra.mxu0 %v798
        %835 = vmatprep.subr.bf16.mxu0 0
        %836 = vmatpush1.bf16.msra.mxu0 %v799
        %837 = vmatprep.subr.bf16.mxu0 0
        %838 = vmatpush1.bf16.msra.mxu0 %v800
        %839 = vmatprep.subr.bf16.mxu0 0
        %840 = vmatpush1.bf16.msra.mxu0 %v801
        %841 = vmatprep.subr.bf16.mxu0 0
        %842 = vmatpush1.bf16.msra.mxu0 %v802
        %843 = vmatprep.subr.bf16.mxu0 0
        %844 = vmatpush1.bf16.msra.mxu0 %v803
        %845 = vmatprep.subr.bf16.mxu0 0
        %846 = vmatpush1.bf16.msra.mxu0 %v804
        %847 = vmatprep.subr.bf16.mxu0 0
        %848 = vmatpush1.bf16.msra.mxu0 %v805
        %849 = vmatprep.subr.bf16.mxu0 0
        %850 = vmatpush1.bf16.msra.mxu0 %v806
        %851 = vmatprep.subr.bf16.mxu0 0
        %852 = vmatpush1.bf16.msra.mxu0 %v807
        %853 = vmatprep.subr.bf16.mxu0 0
        %854 = vmatpush1.bf16.msra.mxu0 %v808
        %855 = vmatprep.subr.bf16.mxu0 0
        %856 = vmatpush1.bf16.msra.mxu0 %v809
        %857 = vmatprep.subr.bf16.mxu0 0
        %858 = vmatpush1.bf16.msra.mxu0 %v810
        %859 = vmatprep.mubr.bf16.mxu0 %v691
        %860 = vmatmul.mubr.bf16.gmra.mrb[0].mxu0 %v690
        %v861 = vpop.f32.mrb[0].mxu0
        %v862 = vadd.f32 %v729, %v861
        %v863 = vpop.f32.mrb[0].mxu0
        %v864 = vpop.f32.mrb[0].mxu0
        %v865 = vadd.f32 %v729, %v864
        %v866 = vpop.f32.mrb[0].mxu0
        %867 = vdwg.mxu0
        %v868 = vmax.f32 %v862, 0.0
        %v869 = vmax.f32 %v865, 0.0
        %v870 = vpack.c.bf16 %v869, %v868
        %v871 = vld [vmem:[#allocation10] sm:$0xf]
        %v872 = vld [vmem:[#allocation10 + $0x4] sm:$0xf]
        %v873 = vld [vmem:[#allocation10 + $0x8] sm:$0xf]
        %v874 = vld [vmem:[#allocation10 + $0xc] sm:$0xf]
        %v875 = vld [vmem:[#allocation10 + $0x10] sm:$0xf]
        %v876 = vld [vmem:[#allocation10 + $0x14] sm:$0xf]
        %v877 = vld [vmem:[#allocation10 + $0x18] sm:$0xf]
        %v878 = vld [vmem:[#allocation10 + $0x1c] sm:$0xf]
        %v879 = vld [vmem:[#allocation10 + $0x20] sm:$0xf]
        %v880 = vld [vmem:[#allocation10 + $0x24] sm:$0xf]
        %v881 = vld [vmem:[#allocation10 + $0x28] sm:$0xf]
        %v882 = vld [vmem:[#allocation10 + $0x2c] sm:$0xf]
        %v883 = vld [vmem:[#allocation10 + $0x30] sm:$0xf]
        %v884 = vld [vmem:[#allocation10 + $0x34] sm:$0xf]
        %v885 = vld [vmem:[#allocation10 + $0x38] sm:$0xf]
        %v886 = vld [vmem:[#allocation10 + $0x3c] sm:$0xf]
        %v887 = vld [vmem:[%s8] sm:$0x1]
        %v889 = vlaneseq
        %v890 = vshrl.u32 %v889, 7
        %v891 = vsub.s32 0, %v890
        %v892 = vrot.slane %v887, %v891
        %v910 = vunpack.c.l.b16 %v871
        %v911 = vunpack.c.l.b16 %v872
        %v912 = vunpack.c.l.b16 %v873
        %v913 = vunpack.c.l.b16 %v874
        %v914 = vunpack.c.l.b16 %v875
        %v915 = vunpack.c.l.b16 %v876
        %v916 = vunpack.c.l.b16 %v877
        %v917 = vunpack.c.l.b16 %v878
        %v918 = vunpack.c.l.b16 %v879
        %v919 = vunpack.c.l.b16 %v880
        %v920 = vunpack.c.l.b16 %v881
        %v921 = vunpack.c.l.b16 %v882
        %v922 = vunpack.c.l.b16 %v883
        %v923 = vunpack.c.l.b16 %v884
        %v924 = vunpack.c.l.b16 %v885
        %v925 = vunpack.c.l.b16 %v886
        %v926 = vpack.c.b16 %v911, %v910
        %v927 = vpack.c.b16 %v913, %v912
        %v928 = vpack.c.b16 %v915, %v914
        %v929 = vpack.c.b16 %v917, %v916
        %v930 = vpack.c.b16 %v919, %v918
        %v931 = vpack.c.b16 %v921, %v920
        %v932 = vpack.c.b16 %v923, %v922
        %v933 = vpack.c.b16 %v925, %v924
        %942 = vmatprep.subr.bf16.mxu0 0
        %943 = vmatpush1.bf16.msra.mxu0 %v926
        %944 = vmatprep.subr.bf16.mxu0 0
        %945 = vmatpush1.bf16.msra.mxu0 %v927
        %946 = vmatprep.subr.bf16.mxu0 0
        %947 = vmatpush1.bf16.msra.mxu0 %v928
        %948 = vmatprep.subr.bf16.mxu0 0
        %949 = vmatpush1.bf16.msra.mxu0 %v929
        %950 = vmatprep.subr.bf16.mxu0 0
        %951 = vmatpush1.bf16.msra.mxu0 %v930
        %952 = vmatprep.subr.bf16.mxu0 0
        %953 = vmatpush1.bf16.msra.mxu0 %v931
        %954 = vmatprep.subr.bf16.mxu0 0
        %955 = vmatpush1.bf16.msra.mxu0 %v932
        %956 = vmatprep.subr.bf16.mxu0 0
        %957 = vmatpush1.bf16.msra.mxu0 %v933
        %958 = vmatprep.subr.bf16.mxu0 0
        %959 = vmatpush1.bf16.msra.mxu0 0
        %960 = vmatprep.subr.bf16.mxu0 0
        %961 = vmatpush1.bf16.msra.mxu0 0
        %962 = vmatprep.subr.bf16.mxu0 0
        %963 = vmatpush1.bf16.msra.mxu0 0
        %964 = vmatprep.subr.bf16.mxu0 0
        %965 = vmatpush1.bf16.msra.mxu0 0
        %966 = vmatprep.subr.bf16.mxu0 0
        %967 = vmatpush1.bf16.msra.mxu0 0
        %968 = vmatprep.subr.bf16.mxu0 0
        %969 = vmatpush1.bf16.msra.mxu0 0
        %970 = vmatprep.subr.bf16.mxu0 0
        %971 = vmatpush1.bf16.msra.mxu0 0
        %972 = vmatprep.subr.bf16.mxu0 0
        %973 = vmatpush1.bf16.msra.mxu0 0
        %974 = vmatprep.mubr.bf16.mxu0 0
        %975 = vmatmul.mubr.bf16.gmra.mrb[0].mxu0 %v870
        %v976 = vpop.f32.mrb[0].mxu0
        %v977 = vadd.f32 %v892, %v976
        %v978 = vpop.f32.mrb[0].mxu0
        %v979 = vpop.f32.mrb[0].mxu0
        %v980 = vadd.f32 %v892, %v979
        %v981 = vpop.f32.mrb[0].mxu0
        %982 = vdwg.mxu0
        %v983 = vxor.u32 %v977, 2147483648
        %v984 = vxor.u32 %v980, 2147483648
        %v985 = vmul.f32 %v983, 1.442695
        %v986 = vpow.pop %v985
        %v987 = vmul.f32 %v984, 1.442695
        %v988 = vpow.pop %v987
        %v989 = vadd.f32 %v986, 1.0
        %v990 = vadd.f32 %v988, 1.0
        %v991 = vrcp.pop %v989
        %v992 = vmul.f32 1.0, %v991
        %v993 = vrcp.pop %v990
        %v994 = vmul.f32 1.0, %v993
        %995 = vst [vmem:[%s408] sm:$0xff] %v992
        %996 = vst [vmem:[%s408 + $0x8] sm:$0xff] %v994
        %s997 = sand.u32 %s230, 1
        %s998 = scalar_lea.sflag [#allocation4], %s997
        %s999 = sand.u32 %s230, 1
        %s1000 = smul.addr %s999, 16
        %s1001 = scalar_lea.vmem [#allocation11], %s1000
        // Predicated region
        $region77: #{tpu_custom_call.1} parent=55 // pred_check
          %p1002 = pneg %p240
        $region78: #{tpu_custom_call.1} parent=55 // pred_check_branch
          %1004 = sbr.rel (%p1002) target = $region80
        $region79: #{tpu_custom_call.1} parent=55 // pred_region
          %s1005 = smul.u32 2, %s28
          %s1007 = ssub.s32 256, 256
          %1008 = vsyncadd %s998, %s1007
          %s1009 = smul.addr %s1005, 128
          %s1010 = scalar_lea.hbm %s9, %s1009
          %s1011 = sshll.u32 %s1001, 4
          %s1012 = int_to_ptr.vmem [resolvable:$true] %s1011
          %1017 = dma.vmem_to_hbm [thread:$0]  %s1012, 256, %s1010, %s998, 128, 128, 8
        $region80: #{tpu_custom_call.1} parent=55 // pred_fallthru
          _
      $region56: #{tpu_custom_call.1} parent=5 // pred_fallthru
        _
      %p1018 = scmp.le.s32.totalorder 2, %s23
      // Predicated region
      $region81: #{tpu_custom_call.1} parent=5 // pred_check
        %p1019 = pneg %p1018
      $region82: #{tpu_custom_call.1} parent=5 // pred_check_branch
        %1021 = sbr.rel (%p1019) target = $region84
      $region83: #{tpu_custom_call.1} parent=5 // pred_region
        %s1022 = ssub.s32 %s23, 2
        // Predicated region
        $region85: #{tpu_custom_call.1} parent=83 // pred_check
          %p1023 = pneg %p246
        $region86: #{tpu_custom_call.1} parent=83 // pred_check_branch
          %1025 = sbr.rel (%p1023) target = $region88
        $region87: #{tpu_custom_call.1} parent=83 // pred_region
          %s1026 = sand.u32 %s231, 1
          %s1027 = scalar_lea.sflag [#allocation4], %s1026
          %s1028 = sand.u32 %s231, 1
          %s1029 = smul.addr %s1028, 16
          %s1030 = scalar_lea.vmem [#allocation11], %s1029
          %1031 = dma.done %s1027, 256
        $region88: #{tpu_custom_call.1} parent=83 // pred_fallthru
          _
      $region84: #{tpu_custom_call.1} parent=5 // pred_fallthru
        _
    $region6: #{tpu_custom_call.1} parent=1 // loop_footer
      %s27 = sadd.s32 1, %s23
    $region7: #{tpu_custom_call.1} parent=1 // loop_footer_branch
      %22 = sbr.rel target = $region3
    $region8: #{tpu_custom_call.1} parent=1 // loop_exit
      _
    %1032 = vsyncpa [#allocation3], 1
    %s1033 = scalar_lea.sflag [#allocation3], 1
    %1034 = vsyncpa %s1033, 1
    %1035 = vsyncpa [#allocation6], 1
    %1036 = vsyncpa [#allocation9], 1
    %1037 = vsyncpa [#allocation4], 1
    %s1038 = scalar_lea.sflag [#allocation4], 1
    %1039 = vsyncpa %s1038, 1

</llo_original>
